<compile_context>
chip_gen: v7x
topology: tpu7x:2x2x1
jax: 0.10.0
libtpu: 0.0.40
codegen_flags: <defaults>
</compile_context>

<pallas_src>
import functools

import jax
import jax.numpy as jnp
from jax import lax
from jax.experimental import pallas as pl
from jax.experimental.pallas import tpu as pltpu


# ----------------------------------------------------------------------------
# Tiled (production) kernel: 1-D grid over txt column tiles, online logsumexp.
# ----------------------------------------------------------------------------
def _loss_kernel_tiled(scale_ref, img_ref, txt_ref, out_ref,
                       m_clip, l_clip, m_neg, l_neg, acc_ref,
                       *, alpha, beta):
    f32 = jnp.float32
    B = img_ref.shape[0]
    half = B // 2
    T = txt_ref.shape[0]
    j = pl.program_id(0)
    n_tiles = pl.num_programs(0)
    scale = scale_ref[0]

    @pl.when(j == 0)
    def _init():
        m_clip[...] = jnp.full(m_clip.shape, -jnp.inf, f32)
        m_neg[...] = jnp.full(m_neg.shape, -jnp.inf, f32)
        l_clip[...] = jnp.zeros(l_clip.shape, f32)
        l_neg[...] = jnp.zeros(l_neg.shape, f32)
        acc_ref[0] = f32(0.0)   # sum of column-direction lse (clip quadrants)
        acc_ref[1] = f32(0.0)   # sum of <img_i, txt_i>            (clip diag)
        acc_ref[2] = f32(0.0)   # sum of <img_i, txt_{i +- half}>   (neg diag)

    img_all = img_ref[...]                       # (B, D), native dtype (bf16/f32)
    txt_tile = txt_ref[...]                      # (T, D)

    # One fused (B, T) similarity block per step; MXU accumulates in f32.
    sim = lax.dot_general(img_all, txt_tile,
                          dimension_numbers=(((1,), (1,)), ((), ())),
                          preferred_element_type=f32)         # (B, T)
    top = sim[0:half, :]                         # rows of img  / img*  vs this tile
    bot = sim[half:, :]

    c0 = pl.multiple_of(j * T, T)                # first sim-column of this tile

    # clip diagonal contribution: <img_i, txt_i> for i in this tile's columns,
    # computed from the features (no B^2 mask).
    img_c = img_ref[pl.ds(c0, T), :].astype(f32)
    acc_ref[1] = acc_ref[1] + jnp.sum(img_c * txt_tile.astype(f32))

    def online_update(m_ref, l_ref, row0, logits):
        rows = pl.ds(row0, half)
        m_old = m_ref[rows, :]
        l_old = l_ref[rows, :]
        m_new = jnp.maximum(m_old, jnp.max(logits, axis=-1, keepdims=True))
        l_new = (l_old * jnp.exp(m_old - m_new)
                 + jnp.sum(jnp.exp(logits - m_new), axis=-1, keepdims=True))
        m_ref[rows, :] = m_new
        l_ref[rows, :] = l_new

    def col_lse_sum(logits):                     # stable lse along rows, summed
        m = jnp.max(logits, axis=0, keepdims=True)
        return jnp.sum(m + jnp.log(jnp.sum(jnp.exp(logits - m),
                                           axis=0, keepdims=True)))

    col_in_first_half = j * T < half             # tiles never straddle the halves

    @pl.when(col_in_first_half)
    def _cols_q11_q21():
        clip_block = scale * top                 # Q11 block (img  vs txt)
        online_update(m_clip, l_clip, 0, clip_block)
        online_update(m_neg, l_neg, half, bot)   # Q21 block (img* vs txt)
        acc_ref[0] = acc_ref[0] + col_lse_sum(clip_block)
        img_n = img_ref[pl.ds(pl.multiple_of(c0 + half, T), T), :].astype(f32)
        acc_ref[2] = acc_ref[2] + jnp.sum(img_n * txt_tile.astype(f32))

    @pl.when(jnp.logical_not(col_in_first_half))
    def _cols_q12_q22():
        clip_block = scale * bot                 # Q22 block (img* vs txt*)
        online_update(m_clip, l_clip, half, clip_block)
        online_update(m_neg, l_neg, 0, top)      # Q12 block (img  vs txt*)
        acc_ref[0] = acc_ref[0] + col_lse_sum(clip_block)
        img_n = img_ref[pl.ds(pl.multiple_of(c0 - half, T), T), :].astype(f32)
        acc_ref[2] = acc_ref[2] + jnp.sum(img_n * txt_tile.astype(f32))

    @pl.when(j == n_tiles - 1)
    def _finalize():
        row_lse_clip = m_clip[...] + jnp.log(l_clip[...])     # (B, 1)
        row_lse_neg = m_neg[...] + jnp.log(l_neg[...])        # (B, 1)
        clip_loss = (jnp.mean(row_lse_clip) + acc_ref[0] / B
                     - scale * acc_ref[1] / half)
        neg_loss = acc_ref[2] - jnp.sum(row_lse_neg)
        out_ref[0] = clip_loss
        out_ref[1] = neg_loss
        out_ref[2] = alpha * clip_loss + beta * neg_loss


# ----------------------------------------------------------------------------
# Fused (grid-less) kernel: fallback for small / unaligned batches.
# ----------------------------------------------------------------------------
def _loss_kernel_fused(scale_ref, img_ref, txt_ref, out_ref, *, alpha, beta):
    f32 = jnp.float32
    scale = scale_ref[0]
    img = img_ref[...]
    txt = txt_ref[...]
    B = img.shape[0]
    half = B // 2

    sim = lax.dot_general(img, txt, dimension_numbers=(((1,), (1,)), ((), ())),
                          preferred_element_type=f32)          # (B, B) f32

    def row_lse(l):
        m = jnp.max(l, axis=-1, keepdims=True)
        return m + jnp.log(jnp.sum(jnp.exp(l - m), axis=-1, keepdims=True))

    def col_lse(l):
        m = jnp.max(l, axis=0, keepdims=True)
        return m + jnp.log(jnp.sum(jnp.exp(l - m), axis=0, keepdims=True))

    imgf = img.astype(f32)
    txtf = txt.astype(f32)
    clip_diag = jnp.sum(imgf * txtf)     # diag(Q11).sum() + diag(Q22).sum()

    if half % 128 == 0:
        # Lane-aligned half: static quadrant slices (half the exp/reduce work,
        # no -inf temporaries, no B x B masks); diagonals from the features.
        q11 = sim[:half, :half]
        q22 = sim[half:, half:]
        q12 = sim[:half, half:]
        q21 = sim[half:, :half]
        sum_row_lse_clip = (jnp.sum(row_lse(scale * q11))
                            + jnp.sum(row_lse(scale * q22)))
        sum_col_lse_clip = (jnp.sum(col_lse(scale * q11))
                            + jnp.sum(col_lse(scale * q22)))
        sum_row_lse_neg = jnp.sum(row_lse(q12)) + jnp.sum(row_lse(q21))
        neg_diag = (jnp.sum(imgf[:half] * txtf[half:])
                    + jnp.sum(imgf[half:] * txtf[:half]))
    else:
        # Unaligned fallback: -inf quadrant selection (NaN-safe — every masked
        # row/column keeps `half` finite entries); masks built from
        # (B,1) x (1,B) predicate broadcasts (no pair of full B x B iotas).
        row_i = lax.broadcasted_iota(jnp.int32, (B, 1), 0)
        col_i = lax.broadcasted_iota(jnp.int32, (1, B), 1)
        block_diag = (row_i < half) == (col_i < half)
        d = col_i - row_i
        neg_inf = f32(-jnp.inf)
        l_clip = jnp.where(block_diag, scale * sim, neg_inf)
        l_neg = jnp.where(block_diag, neg_inf, sim)
        sum_row_lse_clip = jnp.sum(row_lse(l_clip))
        sum_col_lse_clip = jnp.sum(col_lse(l_clip))
        sum_row_lse_neg = jnp.sum(row_lse(l_neg))
        neg_diag = jnp.sum(jnp.where((d == half) | (d == -half), sim, 0.0))

    clip_loss = (sum_row_lse_clip + sum_col_lse_clip) / B - scale * clip_diag / half
    neg_loss = neg_diag - sum_row_lse_neg
    out_ref[0] = clip_loss
    out_ref[1] = neg_loss
    out_ref[2] = alpha * clip_loss + beta * neg_loss


# ----------------------------------------------------------------------------
# Wrapper
# ----------------------------------------------------------------------------
def _vmem_cap_bytes():
    try:
        info = pltpu.get_tpu_info()
        cap = getattr(info, "vmem_capacity_bytes", None)
        if cap:
            return int(cap)
    except Exception:
        pass
    return 64 * 1024 * 1024   # conservative: v7x per-TC physical VMEM


def disparity_maximizing_clip_loss(image_features, text_features, logit_scale, *,
                                   batch_size, alpha=1.0, beta=1.0,
                                   mxu_dtype=None, implementation=None):
    """Returns (clip_loss, dot_product_loss, total_loss) — matching the PyTorch
    module's forward with output_dict=False, world_size=1.

    mxu_dtype: optionally cast features (e.g. jnp.bfloat16) before the MXU
               matmul; accumulation stays f32.
    implementation: None (auto) | "tiled" | "fused".
    """
    assert batch_size % 2 == 0, "batch_size must be even"
    half = batch_size // 2
    img = image_features[:batch_size]
    txt = text_features[:batch_size]
    if mxu_dtype is not None:
        img = img.astype(mxu_dtype)
        txt = txt.astype(mxu_dtype)

    scale = jnp.reshape(jnp.asarray(logit_scale, jnp.float32), (1,))
    B, D = img.shape

    if implementation is None:
        implementation = "tiled" if half % 8 == 0 else "fused"
    if implementation == "tiled" and half % 8 != 0:
        implementation = "fused"

    cap = _vmem_cap_bytes()
    itemsize = jnp.dtype(img.dtype).itemsize
    smem_spec = pl.BlockSpec(memory_space=pltpu.MemorySpace.SMEM)

    if implementation == "tiled":
        if half % 512 == 0:
            tile_n = 512
        elif half % 256 == 0:
            tile_n = 256
        elif half % 128 == 0:
            tile_n = 128
        else:
            tile_n = half          # small batches: one tile per half
        n_tiles = B // tile_n

        need = (B * D * itemsize                 # resident img
                + 4 * tile_n * D * itemsize      # double-buffered txt tiles
                + 6 * B * tile_n * 4             # sim tile + exp temporaries
                + 16 * B * 4                     # running max/sum scratch
                + (2 << 20))
        vmem_limit = int(min(max(need, 8 << 20), int(cap * 0.75)))

        kernel = functools.partial(_loss_kernel_tiled,
                                   alpha=float(alpha), beta=float(beta))
        grid_spec = pltpu.PrefetchScalarGridSpec(
            num_scalar_prefetch=0,
            grid=(n_tiles,),
            in_specs=[
                smem_spec,                                    # logit_scale
                pl.BlockSpec((B, D), lambda j: (0, 0)),       # img, resident
                pl.BlockSpec((tile_n, D), lambda j: (j, 0)),  # txt, streamed
            ],
            out_specs=smem_spec,
            scratch_shapes=[
                pltpu.VMEM((B, 1), jnp.float32),   # m_clip
                pltpu.VMEM((B, 1), jnp.float32),   # l_clip
                pltpu.VMEM((B, 1), jnp.float32),   # m_neg
                pltpu.VMEM((B, 1), jnp.float32),   # l_neg
                pltpu.SMEM((3,), jnp.float32),     # col-lse / diag accumulators
            ],
        )
        out = pl.pallas_call(
            kernel,
            out_shape=jax.ShapeDtypeStruct((3,), jnp.float32),
            grid_spec=grid_spec,
            compiler_params=pltpu.CompilerParams(
                dimension_semantics=("arbitrary",),
                vmem_limit_bytes=vmem_limit),
        )(scale, img, txt)
    else:
        vmem_spec = pl.BlockSpec(memory_space=pltpu.MemorySpace.VMEM)
        feat_bytes = (img.size + txt.size) * itemsize
        sim_bytes = B * B * 4
        need = 2 * feat_bytes + 8 * sim_bytes + (2 << 20)
        vmem_limit = int(min(max(need, 8 << 20), int(cap * 0.75)))

        kernel = functools.partial(_loss_kernel_fused,
                                   alpha=float(alpha), beta=float(beta))
        out = pl.pallas_call(
            kernel,
            out_shape=jax.ShapeDtypeStruct((3,), jnp.float32),
            in_specs=[smem_spec, vmem_spec, vmem_spec],
            out_specs=smem_spec,
            compiler_params=pltpu.CompilerParams(vmem_limit_bytes=vmem_limit),
        )(scale, img, txt)

    return out[0], out[1], out[2]


# ----------------------------------------------------------------------------
# Pure-JAX reference of the PyTorch forward (world_size = 1)
# ----------------------------------------------------------------------------
def _reference(image_features, text_features, logit_scale, batch_size, alpha, beta):
    half = batch_size // 2
    img, img_s = image_features[:half], image_features[half:batch_size]
    txt, txt_s = text_features[:half], text_features[half:batch_size]
    labels = jnp.arange(half)

    def ce(logits):
        logp = jax.nn.log_softmax(logits, axis=-1)
        return -jnp.mean(logp[jnp.arange(half), labels])

    lpi = logit_scale * img @ txt.T
    lpt = logit_scale * txt @ img.T
    loss_1 = (ce(lpi) + ce(lpt)) / 2
    lpi_s = logit_scale * img_s @ txt_s.T
    lpt_s = logit_scale * txt_s @ img_s.T
    loss_2 = (ce(lpi_s) + ce(lpt_s)) / 2
    clip_loss = loss_1 + loss_2

    d1 = jnp.diagonal(jax.nn.softmax(img @ txt_s.T, axis=1))
    d2 = jnp.diagonal(jax.nn.softmax(img_s @ txt.T, axis=1))
    neg_loss = jnp.sum(jnp.log(d1)) + jnp.sum(jnp.log(d2))

    return clip_loss, neg_loss, alpha * clip_loss + beta * neg_loss


if __name__ == "__main__":
    key = jax.random.PRNGKey(0)
    alpha, beta = 1.0, 1.0
    logit_scale = jnp.float32(2.5)

    def make_feats(k, b, d):
        k1, k2 = jax.random.split(k)
        i = jax.random.normal(k1, (b, d), dtype=jnp.float32)
        t = jax.random.normal(k2, (b, d), dtype=jnp.float32)
        i = i / jnp.linalg.norm(i, axis=-1, keepdims=True)
        t = t / jnp.linalg.norm(t, axis=-1, keepdims=True)
        return i, t

    def check(out, ref, atol, rtol, name):
        for o, r in zip(out, ref):
            assert jnp.allclose(o, r, atol=atol, rtol=rtol), (name, o, r)

    # 1) tiny, unaligned half -> fused fallback kernel (-inf quadrant masking)
    img, txt = make_feats(jax.random.fold_in(key, 1), 12, 32)
    out = disparity_maximizing_clip_loss(img, txt, logit_scale,
                                         batch_size=12, alpha=alpha, beta=beta)
    jax.block_until_ready(out)
    check(out, _reference(img, txt, logit_scale, 12, alpha, beta),
          1e-3, 1e-3, "fused-fallback")

    # 2) small, 8-aligned half -> tiled kernel (2 column tiles, f32 MXU)
    img, txt = make_feats(jax.random.fold_in(key, 2), 16, 32)
    out = disparity_maximizing_clip_loss(img, txt, logit_scale,
                                         batch_size=16, alpha=alpha, beta=beta)
    jax.block_until_ready(out)
    check(out, _reference(img, txt, logit_scale, 16, alpha, beta),
          1e-3, 1e-3, "tiled-small")

    # 3) 128-aligned half, f32, forced fused path -> quadrant-slicing branch
    img, txt = make_feats(jax.random.fold_in(key, 3), 256, 128)
    out = disparity_maximizing_clip_loss(img, txt, logit_scale,
                                         batch_size=256, alpha=alpha, beta=beta,
                                         implementation="fused")
    jax.block_until_ready(out)
    check(out, _reference(img, txt, logit_scale, 256, alpha, beta),
          5e-2, 5e-3, "fused-sliced")

    # 4) 128-aligned half, bf16 MXU operands -> tiled kernel, TILE_N = 128
    out = disparity_maximizing_clip_loss(img, txt, logit_scale,
                                         batch_size=256, alpha=alpha, beta=beta,
                                         mxu_dtype=jnp.bfloat16)
    jax.block_until_ready(out)
    img_b = img.astype(jnp.bfloat16).astype(jnp.float32)
    txt_b = txt.astype(jnp.bfloat16).astype(jnp.float32)
    check(out, _reference(img_b, txt_b, logit_scale, 256, alpha, beta),
          2e-1, 5e-3, "tiled-bf16")

    print("KERNEL_OK")
</pallas_src>

<mosaic_0001>
module attributes {stable_mosaic.version = 11 : i64} {
  func.func @_loss_kernel_fused(%arg0: memref<1xf32, #tpu.memory_space<smem>>, %arg1: memref<12x32xf32, #tpu.memory_space<vmem>>, %arg2: memref<12x32xf32, #tpu.memory_space<vmem>>, %arg3: memref<3xf32, #tpu.memory_space<smem>>) attributes {dimension_semantics = [], scalar_prefetch = 0 : i64, scratch_operands = 0 : i64, tpu.core_type = #tpu.core_type<tc>} {
    %c0 = arith.constant 0 : index
    %0 = memref.load %arg0[%c0] : memref<1xf32, #tpu.memory_space<smem>>
    %c0_0 = arith.constant 0 : index
    %c0_1 = arith.constant 0 : index
    %1 = vector.load %arg1[%c0_0, %c0_1] : memref<12x32xf32, #tpu.memory_space<vmem>>, vector<12x32xf32>
    %c0_2 = arith.constant 0 : index
    %c0_3 = arith.constant 0 : index
    %2 = vector.load %arg2[%c0_2, %c0_3] : memref<12x32xf32, #tpu.memory_space<vmem>>, vector<12x32xf32>
    %cst = arith.constant dense<0.000000e+00> : vector<12x12xf32>
    %3 = tpu.matmul %1, %2, %cst {dimension_numbers = #tpu.dot_dimension_numbers<[1], [1], [0], [0], [0, 0, 1, 0], [], []>} : vector<12x32xf32>, vector<12x32xf32>, vector<12x12xf32> -> vector<12x12xf32>
    %4 = arith.mulf %1, %2 : vector<12x32xf32>
    %5 = vector.shape_cast %4 : vector<12x32xf32> to vector<1x12x32xf32>
    %cst_4 = arith.constant dense<0.000000e+00> : vector<1xf32>
    %6 = vector.multi_reduction <add>, %5, %cst_4 [1, 2] : vector<1x12x32xf32> to vector<1xf32>
    %7 = vector.shape_cast %6 : vector<1xf32> to vector<1x1x1xf32>
    %8 = vector.extract %7[0, 0, 0] : f32 from vector<1x1x1xf32>
    %9 = tpu.iota {dimensions = array<i32: 0>} : vector<12x1xi32>
    %10 = tpu.iota {dimensions = array<i32: 1>} : vector<1x12xi32>
    %c6_i32 = arith.constant 6 : i32
    %11 = vector.broadcast %c6_i32 : i32 to vector<12x1xi32>
    %12 = arith.cmpi slt, %9, %11 : vector<12x1xi32>
    %c6_i32_5 = arith.constant 6 : i32
    %13 = vector.broadcast %c6_i32_5 : i32 to vector<1x12xi32>
    %14 = arith.cmpi slt, %10, %13 : vector<1x12xi32>
    %15 = vector.broadcast %12 : vector<12x1xi1> to vector<12x12xi1>
    %16 = vector.broadcast %14 : vector<1x12xi1> to vector<12x12xi1>
    %17 = vector.broadcast %15 : vector<12x12xi1> to vector<12x12xi1>
    %18 = vector.broadcast %16 : vector<12x12xi1> to vector<12x12xi1>
    %19 = arith.xori %17, %18 : vector<12x12xi1>
    %cst_6 = arith.constant dense<true> : vector<12x12xi1>
    %20 = arith.xori %19, %cst_6 : vector<12x12xi1>
    %21 = vector.broadcast %10 : vector<1x12xi32> to vector<12x12xi32>
    %22 = vector.broadcast %9 : vector<12x1xi32> to vector<12x12xi32>
    %23 = arith.subi %21, %22 : vector<12x12xi32>
    %24 = vector.broadcast %0 : f32 to vector<12x12xf32>
    %25 = arith.mulf %24, %3 : vector<12x12xf32>
    %cst_7 = arith.constant 0xFF800000 : f32
    %26 = vector.broadcast %cst_7 : f32 to vector<12x12xf32>
    %27 = arith.select %20, %25, %26 : vector<12x12xi1>, vector<12x12xf32>
    %cst_8 = arith.constant 0xFF800000 : f32
    %28 = vector.broadcast %cst_8 : f32 to vector<12x12xf32>
    %29 = arith.select %20, %28, %3 : vector<12x12xi1>, vector<12x12xf32>
    %cst_9 = arith.constant dense<0xFF800000> : vector<12xf32>
    %30 = vector.multi_reduction <maximumf>, %27, %cst_9 [1] : vector<12x12xf32> to vector<12xf32>
    %31 = vector.shape_cast %30 : vector<12xf32> to vector<12x1xf32>
    %32 = vector.broadcast %31 : vector<12x1xf32> to vector<12x12xf32>
    %33 = arith.subf %27, %32 : vector<12x12xf32>
    %34 = math.exp %33 : vector<12x12xf32>
    %cst_10 = arith.constant dense<0.000000e+00> : vector<12xf32>
    %35 = vector.multi_reduction <add>, %34, %cst_10 [1] : vector<12x12xf32> to vector<12xf32>
    %36 = vector.shape_cast %35 : vector<12xf32> to vector<12x1xf32>
    %37 = math.log %36 : vector<12x1xf32>
    %38 = arith.addf %31, %37 : vector<12x1xf32>
    %39 = vector.shape_cast %38 : vector<12x1xf32> to vector<1x12x1xf32>
    %cst_11 = arith.constant dense<0.000000e+00> : vector<1xf32>
    %40 = vector.multi_reduction <add>, %39, %cst_11 [1, 2] : vector<1x12x1xf32> to vector<1xf32>
    %41 = vector.shape_cast %40 : vector<1xf32> to vector<1x1x1xf32>
    %42 = vector.extract %41[0, 0, 0] : f32 from vector<1x1x1xf32>
    %cst_12 = arith.constant dense<0xFF800000> : vector<12xf32>
    %43 = vector.multi_reduction <maximumf>, %27, %cst_12 [0] : vector<12x12xf32> to vector<12xf32>
    %44 = vector.shape_cast %43 : vector<12xf32> to vector<1x12xf32>
    %45 = vector.broadcast %44 : vector<1x12xf32> to vector<12x12xf32>
    %46 = arith.subf %27, %45 : vector<12x12xf32>
    %47 = math.exp %46 : vector<12x12xf32>
    %cst_13 = arith.constant dense<0.000000e+00> : vector<12xf32>
    %48 = vector.multi_reduction <add>, %47, %cst_13 [0] : vector<12x12xf32> to vector<12xf32>
    %49 = vector.shape_cast %48 : vector<12xf32> to vector<1x12xf32>
    %50 = math.log %49 : vector<1x12xf32>
    %51 = arith.addf %44, %50 : vector<1x12xf32>
    %52 = vector.shape_cast %51 : vector<1x12xf32> to vector<1x1x12xf32>
    %cst_14 = arith.constant dense<0.000000e+00> : vector<1xf32>
    %53 = vector.multi_reduction <add>, %52, %cst_14 [1, 2] : vector<1x1x12xf32> to vector<1xf32>
    %54 = vector.shape_cast %53 : vector<1xf32> to vector<1x1x1xf32>
    %55 = vector.extract %54[0, 0, 0] : f32 from vector<1x1x1xf32>
    %cst_15 = arith.constant dense<0xFF800000> : vector<12xf32>
    %56 = vector.multi_reduction <maximumf>, %29, %cst_15 [1] : vector<12x12xf32> to vector<12xf32>
    %57 = vector.shape_cast %56 : vector<12xf32> to vector<12x1xf32>
    %58 = vector.broadcast %57 : vector<12x1xf32> to vector<12x12xf32>
    %59 = arith.subf %29, %58 : vector<12x12xf32>
    %60 = math.exp %59 : vector<12x12xf32>
    %cst_16 = arith.constant dense<0.000000e+00> : vector<12xf32>
    %61 = vector.multi_reduction <add>, %60, %cst_16 [1] : vector<12x12xf32> to vector<12xf32>
    %62 = vector.shape_cast %61 : vector<12xf32> to vector<12x1xf32>
    %63 = math.log %62 : vector<12x1xf32>
    %64 = arith.addf %57, %63 : vector<12x1xf32>
    %65 = vector.shape_cast %64 : vector<12x1xf32> to vector<1x12x1xf32>
    %cst_17 = arith.constant dense<0.000000e+00> : vector<1xf32>
    %66 = vector.multi_reduction <add>, %65, %cst_17 [1, 2] : vector<1x12x1xf32> to vector<1xf32>
    %67 = vector.shape_cast %66 : vector<1xf32> to vector<1x1x1xf32>
    %68 = vector.extract %67[0, 0, 0] : f32 from vector<1x1x1xf32>
    %c6_i32_18 = arith.constant 6 : i32
    %69 = vector.broadcast %c6_i32_18 : i32 to vector<12x12xi32>
    %70 = arith.cmpi eq, %23, %69 : vector<12x12xi32>
    %c-6_i32 = arith.constant -6 : i32
    %71 = vector.broadcast %c-6_i32 : i32 to vector<12x12xi32>
    %72 = arith.cmpi eq, %23, %71 : vector<12x12xi32>
    %73 = arith.ori %70, %72 : vector<12x12xi1>
    %cst_19 = arith.constant 0.000000e+00 : f32
    %74 = vector.broadcast %cst_19 : f32 to vector<12x12xf32>
    %75 = arith.select %73, %3, %74 : vector<12x12xi1>, vector<12x12xf32>
    %76 = vector.shape_cast %75 : vector<12x12xf32> to vector<1x12x12xf32>
    %cst_20 = arith.constant dense<0.000000e+00> : vector<1xf32>
    %77 = vector.multi_reduction <add>, %76, %cst_20 [1, 2] : vector<1x12x12xf32> to vector<1xf32>
    %78 = vector.shape_cast %77 : vector<1xf32> to vector<1x1x1xf32>
    %79 = vector.extract %78[0, 0, 0] : f32 from vector<1x1x1xf32>
    %80 = arith.addf %42, %55 : f32
    %cst_21 = arith.constant 1.200000e+01 : f32
    %81 = arith.divf %80, %cst_21 : f32
    %82 = arith.mulf %0, %8 : f32
    %cst_22 = arith.constant 6.000000e+00 : f32
    %83 = arith.divf %82, %cst_22 : f32
    %84 = arith.subf %81, %83 : f32
    %85 = arith.subf %79, %68 : f32
    %c0_23 = arith.constant 0 : index
    %86 = memref.load %arg3[%c0_23] : memref<3xf32, #tpu.memory_space<smem>>
    memref.store %84, %arg3[%c0_23] : memref<3xf32, #tpu.memory_space<smem>>
    %c1 = arith.constant 1 : index
    %87 = memref.load %arg3[%c1] : memref<3xf32, #tpu.memory_space<smem>>
    memref.store %85, %arg3[%c1] : memref<3xf32, #tpu.memory_space<smem>>
    %cst_24 = arith.constant 1.000000e+00 : f32
    %88 = arith.mulf %cst_24, %84 : f32
    %cst_25 = arith.constant 1.000000e+00 : f32
    %89 = arith.mulf %cst_25, %85 : f32
    %90 = arith.addf %88, %89 : f32
    %c2 = arith.constant 2 : index
    %91 = memref.load %arg3[%c2] : memref<3xf32, #tpu.memory_space<smem>>
    memref.store %90, %arg3[%c2] : memref<3xf32, #tpu.memory_space<smem>>
    return
  }
}

</mosaic_0001>

<llo_original>
// kernel: tpu_custom_call.1
$region0: #{tpu_custom_call.1}
  #allocation0 [shape = 'u32[]', space=smem, size = 0x4, offset = 0x4, fixed_abs, tag = 'smem constant byte address 0x4 - core index']
  #allocation1 [shape = 'u32[144,128]{1,0:T(1,128)}', space=vmem, size = 0x12000, scoped, tag = 'internal scratch']
  #allocation2 [shape = 'f32[1]{0:T(128)S(6)}', space=smem, size = 0x200, scoped, tag = 'scoped memory for tpu_custom_call.1']
  %s0 = inlined_call_operand.<no memory space> [shape: f32[1], index: 0, kind: input, shape index: {}]
  %s1 = inlined_call_operand.hbm [shape: f32[12,32], index: 1, kind: input, shape index: {}]
  %s2 = inlined_call_operand.hbm [shape: f32[12,32], index: 2, kind: input, shape index: {}]
  %s3 = inlined_call_operand.hbm [shape: f32[3], index: 3, kind: output, shape index: {}]
  %s4 = sld [smem:[#allocation0]]
  $region30: #{tpu_custom_call.1} parent=0
    _
  %s6 = ssub.s32 1, %s4
  %s7 = scalar_select 0, %s6, %s4
  %8 = sst [smem:[#allocation2]] %s0
  $region1: #{tpu_custom_call.1} parent=0
    #allocation3 [shape = 'u8[8192]{0}', space=vmem, size = 0x2000, scoped, tag = 'input window, operand 1, single buffered']
    #allocation4 [shape = 's32[1]{0}', space=sflag, size = 0x4, scoped, tag = 'scoped memory for tpu_custom_call.1']
    #allocation5 [shape = 's32[1]{0}', space=sflag, size = 0x4, scoped, tag = 'scoped memory for tpu_custom_call.1']
    #allocation6 [shape = 'u8[8192]{0}', space=vmem, size = 0x2000, scoped, tag = 'input window, operand 2, single buffered']
    #allocation7 [shape = 's32[1]{0}', space=sflag, size = 0x4, scoped, tag = 'scoped memory for tpu_custom_call.1']
    #allocation8 [shape = 'u8[512]{0}', space=smem, size = 0x200, scoped, tag = 'output window, operand 0, single buffered']
    %9 = vsyncpa [#allocation4], 0
    %10 = vsyncpa [#allocation7], 0
    %11 = vsyncpa [#allocation5], 0
    // Predicated region
    $region2: #{tpu_custom_call.1} parent=1 // pred_check
      _
    $region3: #{tpu_custom_call.1} parent=1 // pred_check_branch
      %13 = sbr.rel (0) target = $region5
    $region4: #{tpu_custom_call.1} parent=1 // pred_region
      _
    $region5: #{tpu_custom_call.1} parent=1 // pred_fallthru
      _
    // Predicated region
    $region6: #{tpu_custom_call.1} parent=1 // pred_check
      _
    $region7: #{tpu_custom_call.1} parent=1 // pred_check_branch
      %15 = sbr.rel (0) target = $region9
    $region8: #{tpu_custom_call.1} parent=1 // pred_region
      %s17 = ssub.s32 256, 256
      %18 = vsyncadd [#allocation4], %s17
      %s19 = sshll.u32 [#allocation3], 4
      %s20 = int_to_ptr.vmem [resolvable:$true] %s19
      %25 = dma.hbm_to_vmem [thread:$0]  %s1, 256, %s20, [#allocation4], 128, 128, 8
    $region9: #{tpu_custom_call.1} parent=1 // pred_fallthru
      _
    // Predicated region
    $region10: #{tpu_custom_call.1} parent=1 // pred_check
      _
    $region11: #{tpu_custom_call.1} parent=1 // pred_check_branch
      %27 = sbr.rel (0) target = $region13
    $region12: #{tpu_custom_call.1} parent=1 // pred_region
      %s29 = ssub.s32 256, 256
      %30 = vsyncadd [#allocation7], %s29
      %s31 = sshll.u32 [#allocation6], 4
      %s32 = int_to_ptr.vmem [resolvable:$true] %s31
      %37 = dma.hbm_to_vmem [thread:$0]  %s2, 256, %s32, [#allocation7], 128, 128, 8
    $region13: #{tpu_custom_call.1} parent=1 // pred_fallthru
      _
    // Predicated region
    $region14: #{tpu_custom_call.1} parent=1 // pred_check
      _
    $region15: #{tpu_custom_call.1} parent=1 // pred_check_branch
      %39 = sbr.rel (0) target = $region17
    $region16: #{tpu_custom_call.1} parent=1 // pred_region
      %40 = dma.done [#allocation4], 256
    $region17: #{tpu_custom_call.1} parent=1 // pred_fallthru
      _
    // Predicated region
    $region18: #{tpu_custom_call.1} parent=1 // pred_check
      _
    $region19: #{tpu_custom_call.1} parent=1 // pred_check_branch
      %42 = sbr.rel (0) target = $region21
    $region20: #{tpu_custom_call.1} parent=1 // pred_region
      %43 = dma.done [#allocation7], 256
    $region21: #{tpu_custom_call.1} parent=1 // pred_fallthru
      _
    %s44 = sld [smem:[#allocation2]]
    %v45 = vld [vmem:[#allocation3] sm:$0xff]
    %v46 = vld [vmem:[#allocation3 + $0x8] sm:$0xf]
    %v47 = vld [vmem:[#allocation6] sm:$0xff]
    %v48 = vld [vmem:[#allocation6 + $0x8] sm:$0xf]
    %vm49 = vcmask 261120
    %v51 = vsel %vm49, %v45, 0
    %v54 = vsel %vm49, %v46, 0
    %v57 = vsel %vm49, %v47, 0
    %v60 = vsel %vm49, %v48, 0
    %62 = vmatprep.subr.mxu0 0.0
    %63 = vmatpush1.xpose.msra.mxu0 %v57
    %64 = vmatprep.subr.mxu0 0.0
    %65 = vmatpush1.xpose.msra.mxu0 %v60
    %66 = vmatprep.subr.mxu0 0.0
    %67 = vmatpush1.xpose.msra.mxu0 0.0
    %68 = vmatprep.subr.mxu0 0.0
    %69 = vmatpush1.xpose.msra.mxu0 0.0
    %70 = vmatprep.subr.mxu0 0.0
    %71 = vmatpush1.xpose.msra.mxu0 0.0
    %72 = vmatprep.subr.mxu0 0.0
    %73 = vmatpush1.xpose.msra.mxu0 0.0
    %74 = vmatprep.subr.mxu0 0.0
    %75 = vmatpush1.xpose.msra.mxu0 0.0
    %76 = vmatprep.subr.mxu0 0.0
    %77 = vmatpush1.xpose.msra.mxu0 0.0
    %78 = vmatprep.subr.mxu0 0.0
    %79 = vmatpush1.xpose.msra.mxu0 0.0
    %80 = vmatprep.subr.mxu0 0.0
    %81 = vmatpush1.xpose.msra.mxu0 0.0
    %82 = vmatprep.subr.mxu0 0.0
    %83 = vmatpush1.xpose.msra.mxu0 0.0
    %84 = vmatprep.subr.mxu0 0.0
    %85 = vmatpush1.xpose.msra.mxu0 0.0
    %86 = vmatprep.subr.mxu0 0.0
    %87 = vmatpush1.xpose.msra.mxu0 0.0
    %88 = vmatprep.subr.mxu0 0.0
    %89 = vmatpush1.xpose.msra.mxu0 0.0
    %90 = vmatprep.subr.mxu0 0.0
    %91 = vmatpush1.xpose.msra.mxu0 0.0
    %92 = vmatprep.subr.mxu0 0.0
    %93 = vmatpush1.xpose.msra.mxu0 0.0
    %94 = vmatprep.subr.mxu0 0.0
    %95 = vmatpush1.xpose.msra.mxu0 0.0
    %96 = vmatprep.subr.mxu0 0.0
    %97 = vmatpush1.xpose.msra.mxu0 0.0
    %98 = vmatprep.subr.mxu0 0.0
    %99 = vmatpush1.xpose.msra.mxu0 0.0
    %100 = vmatprep.subr.mxu0 0.0
    %101 = vmatpush1.xpose.msra.mxu0 0.0
    %102 = vmatprep.subr.mxu0 0.0
    %103 = vmatpush1.xpose.msra.mxu0 0.0
    %104 = vmatprep.subr.mxu0 0.0
    %105 = vmatpush1.xpose.msra.mxu0 0.0
    %106 = vmatprep.subr.mxu0 0.0
    %107 = vmatpush1.xpose.msra.mxu0 0.0
    %108 = vmatprep.subr.mxu0 0.0
    %109 = vmatpush1.xpose.msra.mxu0 0.0
    %110 = vmatprep.subr.mxu0 0.0
    %111 = vmatpush1.xpose.msra.mxu0 0.0
    %112 = vmatprep.subr.mxu0 0.0
    %113 = vmatpush1.xpose.msra.mxu0 0.0
    %114 = vmatprep.subr.mxu0 0.0
    %115 = vmatpush1.xpose.msra.mxu0 0.0
    %116 = vmatprep.subr.mxu0 0.0
    %117 = vmatpush1.xpose.msra.mxu0 0.0
    %118 = vmatprep.subr.mxu0 0.0
    %119 = vmatpush1.xpose.msra.mxu0 0.0
    %120 = vmatprep.subr.mxu0 0.0
    %121 = vmatpush1.xpose.msra.mxu0 0.0
    %122 = vmatprep.subr.mxu0 0.0
    %123 = vmatpush1.xpose.msra.mxu0 0.0
    %124 = vmatprep.subr.mxu0 0.0
    %125 = vmatpush1.xpose.msra.mxu0 0.0
    %126 = vmatprep.mubr.f32.mxu0 0.0
    %127 = vmatmul.mubr.f32.gmra.mrb[0].mxu0 %v51
    %v128 = vpop.f32.mrb[0].mxu0
    %v129 = vadd.f32 0.0, %v128
    %v130 = vpop.f32.mrb[0].mxu0
    %131 = vmatprep.mubr.f32.mxu0 0.0
    %132 = vmatmul.mubr.f32.gmra.mrb[0].mxu0 %v54
    %v133 = vpop.f32.mrb[0].mxu0
    %v134 = vadd.f32 0.0, %v133
    %v135 = vpop.f32.mrb[0].mxu0
    %136 = vdwg.mxu0
    %v137 = vmul.f32 %v45, %v47
    %v138 = vmul.f32 %v46, %v48
    %v139 = vsel %vm49, %v137, 0.0
    %vm140 = vcmask 257024
    %v141 = vsel %vm140, %v138, 0.0
    %v142 = vadd.f32 %v139, %v141
    %143 = vadd.xlane.f32.xlu0 %v142
    %v144 = vpop.xlane.xlu0 %143
    %v145 = vrot.slane %v144, 4
    %v146 = vadd.f32 %v144, %v145
    %v147 = vrot.slane %v146, 2
    %v148 = vadd.f32 %v146, %v147
    %v149 = vrot.slane %v148, 1
    %v150 = vadd.f32 %v148, %v149
    %s151 = vtos %v150
    %v152 = vlaneseq
    %v153 = vshrl.u32 %v152, 7
    %v154 = vadd.s32 %v153, 8
    %v155 = vlaneseq
    %v156 = vand.u32 %v155, 127
    %vm157 = vcmp.lt.s32.totalorder %v153, 6
    %vm158 = vcmp.lt.s32.totalorder %v154, 6
    %vm159 = vcmp.lt.s32.totalorder %v156, 6
    %v160 = vsel %vm157, 1, 0
    %v161 = vsel %vm158, 1, 0
    %vm162 = vcmp.eq.s32.totalorder %v160, 1
    %vm163 = vcmp.eq.s32.totalorder %v161, 1
    %v164 = vsel %vm159, 1, 0
    %vm165 = vcmp.eq.s32.totalorder %v164, 1
    %vm166 = vmxor %vm162, %vm165
    %vm167 = vmxor %vm163, %vm165
    %vm168 = vmxor %vm166, 1
    %vm169 = vmxor %vm167, 1
    %v170 = vsub.s32 %v156, %v153
    %v171 = vsub.s32 %v156, %v154
    %v172 = vstv %s44
    %v173 = vmul.f32 %v172, %v129
    %v174 = vmul.f32 %v172, %v134
    %v175 = vsel %vm168, %v173, -inf
    %v176 = vsel %vm169, %v174, -inf
    %v177 = vsel %vm168, -inf, %v129
    %v178 = vsel %vm169, -inf, %v134
    %vm179 = vcmask 97280
    %v180 = vsel %vm179, %v175, -inf
    %181 = vmax.xlane.f32.xlu0 %v180
    %v182 = vpop.xlane.xlu0 %181
    %vm183 = vcmask 93184
    %v184 = vsel %vm183, %v176, -inf
    %185 = vmax.xlane.f32.xlu0 %v184
    %v186 = vpop.xlane.xlu0 %185
    %v187 = vsub.f32 %v175, %v182
    %v188 = vsub.f32 %v176, %v186
    %v189 = vmul.f32 %v187, 1.442695
    %v190 = vpow.pop %v189
    %v191 = vmul.f32 %v188, 1.442695
    %v192 = vpow.pop %v191
    %v193 = vsel %vm179, %v190, 0.0
    %194 = vadd.xlane.f32.xlu0 %v193
    %v195 = vpop.xlane.xlu0 %194
    %v196 = vsel %vm183, %v192, 0.0
    %197 = vadd.xlane.f32.xlu0 %v196
    %v198 = vpop.xlane.xlu0 %197
    %v199 = vlog2.pop %v195
    %v200 = vmul.f32 %v199, 0.6931472
    %v201 = vlog2.pop %v198
    %v202 = vmul.f32 %v201, 0.6931472
    %v203 = vadd.f32 %v182, %v200
    %v204 = vadd.f32 %v186, %v202
    %vm205 = vcmask 7168
    %v206 = vsel %vm205, %v203, 0.0
    %vm207 = vcmask 3072
    %v208 = vsel %vm207, %v204, 0.0
    %v209 = vadd.f32 %v206, %v208
    %210 = vadd.xlane.f32.xlu0 %v209
    %v211 = vpop.xlane.xlu0 %210
    %v212 = vrot.slane %v211, 4
    %v213 = vadd.f32 %v211, %v212
    %v214 = vrot.slane %v213, 2
    %v215 = vadd.f32 %v213, %v214
    %v216 = vrot.slane %v215, 1
    %v217 = vadd.f32 %v215, %v216
    %s218 = vtos %v217
    %v219 = vmax.f32 %v180, %v184
    %v220 = vrot.slane %v219, 4
    %v221 = vmax.f32 %v219, %v220
    %v222 = vrot.slane %v221, 2
    %v223 = vmax.f32 %v221, %v222
    %v224 = vrot.slane %v223, 1
    %v225 = vmax.f32 %v223, %v224
    %v226 = vsub.f32 %v175, %v225
    %v227 = vsub.f32 %v176, %v225
    %v228 = vmul.f32 %v226, 1.442695
    %v229 = vpow.pop %v228
    %v230 = vmul.f32 %v227, 1.442695
    %v231 = vpow.pop %v230
    %v232 = vsel %vm179, %v229, 0.0
    %v233 = vsel %vm183, %v231, 0.0
    %v234 = vadd.f32 %v232, %v233
    %v235 = vrot.slane %v234, 4
    %v236 = vadd.f32 %v234, %v235
    %v237 = vrot.slane %v236, 2
    %v238 = vadd.f32 %v236, %v237
    %v239 = vrot.slane %v238, 1
    %v240 = vadd.f32 %v238, %v239
    %v241 = vlog2.pop %v240
    %v242 = vmul.f32 %v241, 0.6931472
    %v243 = vadd.f32 %v225, %v242
    %vm244 = vcmask 90112
    %v245 = vsel %vm244, %v243, 0.0
    %246 = vadd.xlane.f32.xlu0 %v245
    %v247 = vpop.xlane.xlu0 %246
    %v248 = vrot.slane %v247, 4
    %v249 = vadd.f32 %v247, %v248
    %v250 = vrot.slane %v249, 2
    %v251 = vadd.f32 %v249, %v250
    %v252 = vrot.slane %v251, 1
    %v253 = vadd.f32 %v251, %v252
    %s254 = vtos %v253
    %v255 = vsel %vm179, %v177, -inf
    %256 = vmax.xlane.f32.xlu0 %v255
    %v257 = vpop.xlane.xlu0 %256
    %v258 = vsel %vm183, %v178, -inf
    %259 = vmax.xlane.f32.xlu0 %v258
    %v260 = vpop.xlane.xlu0 %259
    %v261 = vsub.f32 %v177, %v257
    %v262 = vsub.f32 %v178, %v260
    %v263 = vmul.f32 %v261, 1.442695
    %v264 = vpow.pop %v263
    %v265 = vmul.f32 %v262, 1.442695
    %v266 = vpow.pop %v265
    %v267 = vsel %vm179, %v264, 0.0
    %268 = vadd.xlane.f32.xlu0 %v267
    %v269 = vpop.xlane.xlu0 %268
    %v270 = vsel %vm183, %v266, 0.0
    %271 = vadd.xlane.f32.xlu0 %v270
    %v272 = vpop.xlane.xlu0 %271
    %v273 = vlog2.pop %v269
    %v274 = vmul.f32 %v273, 0.6931472
    %v275 = vlog2.pop %v272
    %v276 = vmul.f32 %v275, 0.6931472
    %v277 = vadd.f32 %v257, %v274
    %v278 = vadd.f32 %v260, %v276
    %v279 = vsel %vm205, %v277, 0.0
    %v280 = vsel %vm207, %v278, 0.0
    %v281 = vadd.f32 %v279, %v280
    %282 = vadd.xlane.f32.xlu0 %v281
    %v283 = vpop.xlane.xlu0 %282
    %v284 = vrot.slane %v283, 4
    %v285 = vadd.f32 %v283, %v284
    %v286 = vrot.slane %v285, 2
    %v287 = vadd.f32 %v285, %v286
    %v288 = vrot.slane %v287, 1
    %v289 = vadd.f32 %v287, %v288
    %s290 = vtos %v289
    %vm291 = vcmp.eq.s32.totalorder %v170, 6
    %vm292 = vcmp.eq.s32.totalorder %v171, 6
    %vm293 = vcmp.eq.s32.totalorder %v170, 4294967290
    %vm294 = vcmp.eq.s32.totalorder %v171, 4294967290
    %vm295 = vmor %vm291, %vm293
    %vm296 = vmor %vm292, %vm294
    %v297 = vsel %vm295, %v129, 0.0
    %v298 = vsel %vm296, %v134, 0.0
    %v299 = vsel %vm179, %v297, 0.0
    %v300 = vsel %vm183, %v298, 0.0
    %v301 = vadd.f32 %v299, %v300
    %302 = vadd.xlane.f32.xlu0 %v301
    %v303 = vpop.xlane.xlu0 %302
    %v304 = vrot.slane %v303, 4
    %v305 = vadd.f32 %v303, %v304
    %v306 = vrot.slane %v305, 2
    %v307 = vadd.f32 %v305, %v306
    %v308 = vrot.slane %v307, 1
    %v309 = vadd.f32 %v307, %v308
    %s310 = vtos %v309
    %s311 = sadd.f32 %s218, %s254
    %v312 = vrcp.pop 12.0
    %s313 = vtos %v312
    %s314 = smul.f32 %s311, %s313
    %s315 = smul.f32 %s44, %s151
    %v316 = vrcp.pop 6.0
    %s317 = vtos %v316
    %s318 = smul.f32 %s315, %s317
    %s319 = ssub.f32 %s314, %s318
    %s320 = ssub.f32 %s310, %s290
    %s321 = scalar_lea.smem [#allocation8], 0
    %322 = sst [smem:[%s321]] %s319
    %s323 = scalar_lea.smem [#allocation8], 1
    %324 = sst [smem:[%s323]] %s320
    %s325 = sadd.f32 %s319, %s320
    %s326 = scalar_lea.smem [#allocation8], 2
    %327 = sst [smem:[%s326]] %s325
    // Predicated region
    $region22: #{tpu_custom_call.1} parent=1 // pred_check
      _
    $region23: #{tpu_custom_call.1} parent=1 // pred_check_branch
      %329 = sbr.rel (0) target = $region25
    $region24: #{tpu_custom_call.1} parent=1 // pred_region
      %s331 = ssub.s32 16, 16
      %332 = vsyncadd [#allocation5], %s331
      %335 = dma.smem_to_hbm [#allocation8], 16, %s3, [#allocation5]
    $region25: #{tpu_custom_call.1} parent=1 // pred_fallthru
      _
    // Predicated region
    $region26: #{tpu_custom_call.1} parent=1 // pred_check
      _
    $region27: #{tpu_custom_call.1} parent=1 // pred_check_branch
      %337 = sbr.rel (0) target = $region29
    $region28: #{tpu_custom_call.1} parent=1 // pred_region
      %338 = dma.done [#allocation5], 16
    $region29: #{tpu_custom_call.1} parent=1 // pred_fallthru
      _
    %339 = sfence
    %340 = vsyncpa [#allocation4], 1
    %341 = vsyncpa [#allocation7], 1
    %342 = vsyncpa [#allocation5], 1

</llo_original>
